<compile_context>
chip_gen: v6e
topology: v6e:2x2x1
jax: 0.10.0
libtpu: 0.0.40
codegen_flags: <defaults>
</compile_context>

<pallas_src>
import functools

import jax
import jax.numpy as jnp
from jax import lax
from jax.experimental import pallas as pl
from jax.experimental.pallas import tpu as pltpu

EPS = 1e-5
LANE = 128     # lane (last-dim) tiling unit
SUBLANE = 8    # sublane (second-to-last dim) tiling unit


# ------------------------------ small helpers -------------------------------

def _round_up(n, m):
    return ((n + m - 1) // m) * m


def _align_lanes(n):
    # (8,128) is the hardware tile; channel/K axes above one lane-tile pad to 256
    # so v6e/v7x's 256-wide MXUs see full passes (v5e's 128x128 MXU just runs two).
    return _round_up(n, LANE) if n <= LANE else _round_up(n, 2 * LANE)


def _pad2d(a, rows, cols):
    r, c = a.shape
    return jnp.pad(a, ((0, rows - r), (0, cols - c)))


def _vmem_limit_bytes():
    phys = 64 * 1024 * 1024          # conservative fallback (v7x per-TC VMEM)
    try:
        info = pltpu.get_tpu_info()
        phys = int(getattr(info, "vmem_capacity_bytes", phys))
    except Exception:
        pass
    return int(min(phys * 3 // 4, 96 * 1024 * 1024))


_VMEM_LIMIT = _vmem_limit_bytes()

_COMPILER_PARAMS = pltpu.CompilerParams(
    # (Cout tiles, BN phase, M tiles): Cout tiles are fully independent
    # (per-channel BN stats) -> "parallel" shards them across v7x's 2 TensorCores.
    dimension_semantics=("parallel", "arbitrary", "arbitrary"),
    vmem_limit_bytes=_VMEM_LIMIT,
)


def _pick_m_tile(m_rows, bytes_per_row, max_m_tile=None):
    """Largest sublane-aligned M tile whose double-buffered per-step streams fit in
    roughly half the scoped-VMEM budget (rest: resident weights, scratch, headroom)."""
    budget = max(_VMEM_LIMIT // 2, 1 << 20)
    cap = budget // max(bytes_per_row, 1)
    cap = max(SUBLANE, (cap // SUBLANE) * SUBLANE)
    cap = min(cap, 4096)
    if max_m_tile is not None:
        cap = min(cap, max(SUBLANE, (max_m_tile // SUBLANE) * SUBLANE))
    return int(min(_round_up(m_rows, SUBLANE), cap))


# ------------------------------ Pallas kernels -------------------------------

def _bn_relu_epilogue(y, skip, g_ref, b_ref, o_ref, shift_ref, s1_ref, s2_ref,
                      *, m_valid, m_padded):
    """Two-phase training-mode BatchNorm + residual add + ReLU.

    Grid layout is (cout_tile, phase, m_tile).  Phase 0 accumulates per-channel
    *shifted* sum / sum-of-squares of `y` over all M tiles into VMEM scratch; the
    last phase normalizes with the complete stats, adds `skip`, applies ReLU and
    stores.  With a single M tile the grid has one phase (single pass, no
    recompute of the matmul)."""
    phase = pl.program_id(1)
    mt = pl.program_id(2)
    last_phase = pl.num_programs(1) - 1

    @pl.when((phase == 0) & (mt == 0))
    def _init():
        # shift ~ first-tile mean -> cancellation-free variance accumulation.
        shift_ref[...] = jnp.mean(y, axis=0, keepdims=True)
        s1_ref[...] = jnp.zeros_like(s1_ref)
        s2_ref[...] = jnp.zeros_like(s2_ref)

    @pl.when(phase == 0)
    def _accumulate():
        d = y - shift_ref[...]
        s1_ref[...] += jnp.sum(d, axis=0, keepdims=True)
        s2_ref[...] += jnp.sum(d * d, axis=0, keepdims=True)

    @pl.when(phase == last_phase)
    def _normalize_store():
        inv_m = 1.0 / float(m_valid)
        n_pad = float(m_padded - m_valid)
        shift = shift_ref[...]
        # Zero-padded rows produced y == 0, i.e. contributed (-shift, shift^2) to
        # the sums; remove them analytically so stats are exact over valid rows.
        s1 = s1_ref[...] + n_pad * shift
        s2 = s2_ref[...] - n_pad * shift * shift
        mean_c = s1 * inv_m                              # E[y - shift]
        var = jnp.maximum(s2 * inv_m - mean_c * mean_c, 0.0)
        scale = lax.rsqrt(var + EPS) * g_ref[...]
        out = (y - (mean_c + shift)) * scale + b_ref[...] + skip
        o_ref[...] = jnp.maximum(out, 0.0).astype(o_ref.dtype)


def _conv_bn_relu_kernel(a_ref, w_ref, g_ref, b_ref, o_ref,
                         shift_ref, s1_ref, s2_ref, *, m_valid, m_padded):
    # conv1-as-matmul (bf16 operands, f32 accumulation) + BN1 + ReLU -> bf16 out.
    y = jnp.dot(a_ref[...], w_ref[...], preferred_element_type=jnp.float32)
    _bn_relu_epilogue(y, 0.0, g_ref, b_ref, o_ref, shift_ref, s1_ref, s2_ref,
                      m_valid=m_valid, m_padded=m_padded)


def _conv_bn_add_relu_merged_kernel(a_ref, w_ref, g_ref, b_ref, b3_ref, o_ref,
                                    shift_ref, s1_ref, s2_ref, *, m_valid, m_padded):
    # conv2 AND the 1x1 shortcut conv in ONE MXU dot: A = [a2 | a3] along K with a
    # block-diagonal weight [[W2 0],[0 W3]], so the result lanes are
    # [conv2 | shortcut] and BN2 still normalizes conv2's output alone.
    ct = o_ref.shape[-1]
    z = jnp.dot(a_ref[...], w_ref[...], preferred_element_type=jnp.float32)
    y = z[:, :ct]
    skip = z[:, ct:] + b3_ref[...]
    _bn_relu_epilogue(y, skip, g_ref, b_ref, o_ref, shift_ref, s1_ref, s2_ref,
                      m_valid=m_valid, m_padded=m_padded)


def _conv_bn_add_relu_identity_kernel(a_ref, w_ref, g_ref, b_ref, s_ref, o_ref,
                                      shift_ref, s1_ref, s2_ref, *, m_valid, m_padded):
    # conv2 + identity shortcut (bf16 stream, upcast for the add) + BN2 + ReLU.
    y = jnp.dot(a_ref[...], w_ref[...], preferred_element_type=jnp.float32)
    skip = s_ref[...].astype(jnp.float32)
    _bn_relu_epilogue(y, skip, g_ref, b_ref, o_ref, shift_ref, s1_ref, s2_ref,
                      m_valid=m_valid, m_padded=m_padded)


# ------------------------------ kernel wrappers -------------------------------

def _grid(Mp, mt, Cp, ct):
    n_mt = Mp // mt
    n_phase = 1 if n_mt == 1 else 2    # single M tile -> single-pass BN
    return (Cp // ct, n_phase, n_mt)


def _vec_spec(ct):
    return pl.BlockSpec((1, ct), lambda c, ph, m: (0, c))


def _scratch(ct):
    return [pltpu.VMEM((1, ct), jnp.float32) for _ in range(3)]


def conv_bn_relu(a, w, gamma, beta, *, m_valid, mt, ct):
    Mp, Kp = a.shape
    Cp = w.shape[1]
    kernel = functools.partial(_conv_bn_relu_kernel, m_valid=m_valid, m_padded=Mp)
    return pl.pallas_call(
        kernel,
        out_shape=jax.ShapeDtypeStruct((Mp, Cp), jnp.bfloat16),   # bf16 inter-stage
        grid=_grid(Mp, mt, Cp, ct),
        in_specs=[pl.BlockSpec((mt, Kp), lambda c, ph, m: (m, 0)),
                  pl.BlockSpec((Kp, ct), lambda c, ph, m: (0, c)),
                  _vec_spec(ct), _vec_spec(ct)],
        out_specs=pl.BlockSpec((mt, ct), lambda c, ph, m: (m, c)),
        scratch_shapes=_scratch(ct),
        compiler_params=_COMPILER_PARAMS,
    )(a, w, gamma, beta)


def conv_bn_add_relu_merged(a, w, gamma, beta, b3, *, m_valid, mt, ct):
    Mp, Kp = a.shape
    Cp = w.shape[1] // 2
    kernel = functools.partial(_conv_bn_add_relu_merged_kernel,
                               m_valid=m_valid, m_padded=Mp)
    return pl.pallas_call(
        kernel,
        out_shape=jax.ShapeDtypeStruct((Mp, Cp), jnp.float32),
        grid=_grid(Mp, mt, Cp, ct),
        in_specs=[pl.BlockSpec((mt, Kp), lambda c, ph, m: (m, 0)),
                  pl.BlockSpec((Kp, 2 * ct), lambda c, ph, m: (0, c)),
                  _vec_spec(ct), _vec_spec(ct), _vec_spec(ct)],
        out_specs=pl.BlockSpec((mt, ct), lambda c, ph, m: (m, c)),
        scratch_shapes=_scratch(ct),
        compiler_params=_COMPILER_PARAMS,
    )(a, w, gamma, beta, b3)


def conv_bn_add_relu_identity(a, w, gamma, beta, skip, *, m_valid, mt, ct):
    Mp, Kp = a.shape
    Cp = w.shape[1]
    kernel = functools.partial(_conv_bn_add_relu_identity_kernel,
                               m_valid=m_valid, m_padded=Mp)
    return pl.pallas_call(
        kernel,
        out_shape=jax.ShapeDtypeStruct((Mp, Cp), jnp.float32),
        grid=_grid(Mp, mt, Cp, ct),
        in_specs=[pl.BlockSpec((mt, Kp), lambda c, ph, m: (m, 0)),
                  pl.BlockSpec((Kp, ct), lambda c, ph, m: (0, c)),
                  _vec_spec(ct), _vec_spec(ct),
                  pl.BlockSpec((mt, ct), lambda c, ph, m: (m, c))],
        out_specs=pl.BlockSpec((mt, ct), lambda c, ph, m: (m, c)),
        scratch_shapes=_scratch(ct),
        compiler_params=_COMPILER_PARAMS,
    )(a, w, gamma, beta, skip)


# --------------------------------- JAX glue -----------------------------------

def im2col(x_nhwc, kh, kw, stride, pad):
    """Conv patch extraction (host-side XLA glue). Returns (N*Ho*Wo, kh*kw*C), Ho, Wo."""
    N, H, W, C = x_nhwc.shape
    xp = jnp.pad(x_nhwc, ((0, 0), (pad, pad), (pad, pad), (0, 0)))
    Ho = (H + 2 * pad - kh) // stride + 1
    Wo = (W + 2 * pad - kw) // stride + 1
    cols = []
    for i in range(kh):
        for j in range(kw):
            cols.append(xp[:, i:i + stride * Ho:stride, j:j + stride * Wo:stride, :])
    col = jnp.concatenate(cols, axis=-1)                # (N, Ho, Wo, kh*kw*C)
    return col.reshape(N * Ho * Wo, kh * kw * C), Ho, Wo


def w_to_mat(w_oihw):
    """PyTorch OIHW conv weight -> (KH*KW*Cin, Cout), matching im2col column order."""
    O, I, KH, KW = w_oihw.shape
    return jnp.transpose(w_oihw, (2, 3, 1, 0)).reshape(KH * KW * I, O)


def residual_forward(x_nchw, p, use_1x1conv, strides, max_m_tile=None):
    """Pallas implementation of Residual.forward (PyTorch NCHW in/out)."""
    x = jnp.transpose(x_nchw, (0, 2, 3, 1)).astype(jnp.float32)   # NCHW -> NHWC
    N, H, W, Cin = x.shape
    Cout = p["w1"].shape[0]
    Cp = _align_lanes(Cout)
    CT = min(Cp, 2 * LANE)            # 128- or 256-wide Cout tiles

    g1 = _pad2d(p["g1"].reshape(1, -1), 1, Cp)
    be1 = _pad2d(p["be1"].reshape(1, -1), 1, Cp)
    g2 = _pad2d(p["g2"].reshape(1, -1), 1, Cp)
    be2 = _pad2d(p["be2"].reshape(1, -1), 1, Cp)

    # ---- stage 1: conv1 (3x3, stride, pad=1) + BN1 + ReLU, fused -> bf16 ----
    col1, Ho, Wo = im2col(x, 3, 3, strides, 1)                    # (M, 9*Cin)
    M, K1 = col1.shape
    K1p = _align_lanes(K1)
    mt1 = _pick_m_tile(M, 2 * (K1p * 2 + Cp * 2) + 3 * Cp * 4, max_m_tile)
    Mp1 = _round_up(M, mt1)
    a1 = _pad2d(col1, Mp1, K1p).astype(jnp.bfloat16)
    w1 = _pad2d(w_to_mat(p["w1"]), K1p, Cp).astype(jnp.bfloat16)  # b1 dropped (BN)
    y1 = conv_bn_relu(a1, w1, g1, be1, m_valid=M, mt=mt1, ct=CT)  # (Mp1, Cp) bf16

    # ---- stage 2: conv2 (3x3, pad=1) + shortcut + BN2 + add + ReLU, fused ----
    y1_nhwc = y1[:M, :Cout].reshape(N, Ho, Wo, Cout)              # bf16
    col2, Ho2, Wo2 = im2col(y1_nhwc, 3, 3, 1, 1)                  # (M, 9*Cout) bf16
    K2p = _align_lanes(col2.shape[1])
    w2m = _pad2d(w_to_mat(p["w2"]), K2p, Cp)                      # b2 dropped (BN)

    if use_1x1conv:
        col3, _, _ = im2col(x, 1, 1, strides, 0)                  # (M, Cin)
        K3p = _align_lanes(Cin)
        Kt = K2p + K3p
        mt2 = _pick_m_tile(M, 2 * (Kt * 2 + Cp * 4) + 4 * Cp * 4, max_m_tile)
        Mp2 = _round_up(M, mt2)
        a2 = jnp.concatenate(
            [_pad2d(col2, Mp2, K2p),
             _pad2d(col3.astype(jnp.bfloat16), Mp2, K3p)], axis=1)  # (Mp2, Kt) bf16
        w3m = _pad2d(w_to_mat(p["w3"]), K3p, Cp)
        # Block-diagonal merged weight, columns grouped [conv2 | shortcut] per
        # Cout tile so each tile's weight block is one contiguous lane range.
        zt = jnp.zeros((K2p, CT), w2m.dtype)
        zb = jnp.zeros((K3p, CT), w3m.dtype)
        blocks = []
        for c in range(Cp // CT):
            sl = slice(c * CT, (c + 1) * CT)
            blocks.append(jnp.concatenate(
                [jnp.concatenate([w2m[:, sl], zt], axis=1),
                 jnp.concatenate([zb, w3m[:, sl]], axis=1)], axis=0))
        wm = jnp.concatenate(blocks, axis=1).astype(jnp.bfloat16)   # (Kt, 2*Cp)
        b3 = _pad2d(p["b3"].reshape(1, -1), 1, Cp)
        out = conv_bn_add_relu_merged(a2, wm, g2, be2, b3,
                                      m_valid=M, mt=mt2, ct=CT)
    else:
        assert strides == 1 and Cin == Cout, "identity shortcut needs stride=1, Cin==Cout"
        mt2 = _pick_m_tile(M, 2 * (K2p * 2 + Cp * 2 + Cp * 4) + 3 * Cp * 4, max_m_tile)
        Mp2 = _round_up(M, mt2)
        a2 = _pad2d(col2, Mp2, K2p)                                 # bf16
        w2 = w2m.astype(jnp.bfloat16)
        skip = _pad2d(x.reshape(N * H * W, Cin), Mp2, Cp).astype(jnp.bfloat16)
        out = conv_bn_add_relu_identity(a2, w2, g2, be2, skip,
                                        m_valid=M, mt=mt2, ct=CT)

    out_nhwc = out[:M, :Cout].reshape(N, Ho2, Wo2, Cout)
    return jnp.transpose(out_nhwc, (0, 3, 1, 2))                  # NHWC -> NCHW


# ----------------------------- pure-JAX references -----------------------------

def ref_residual(x, p, use_1x1conv, strides, quantize_matmul_inputs=False):
    """f32 reference of the PyTorch module. With quantize_matmul_inputs=True the
    conv operands (and the identity skip) are rounded to bf16 first, mirroring the
    kernel's MXU feed / bf16 intermediates."""
    if quantize_matmul_inputs:
        q = lambda t: t.astype(jnp.bfloat16).astype(jnp.float32)
    else:
        q = lambda t: t

    def conv(inp, w, b, s, pad):
        y = lax.conv_general_dilated(q(inp), q(w), (s, s), ((pad, pad), (pad, pad)),
                                     dimension_numbers=("NCHW", "OIHW", "NCHW"))
        return y + b[None, :, None, None]

    def bn(y, g, beta):
        m = jnp.mean(y, axis=(0, 2, 3), keepdims=True)
        v = jnp.mean(jnp.square(y - m), axis=(0, 2, 3), keepdims=True)
        return ((y - m) * lax.rsqrt(v + EPS) * g[None, :, None, None]
                + beta[None, :, None, None])

    Y = jax.nn.relu(bn(conv(x, p["w1"], p["b1"], strides, 1), p["g1"], p["be1"]))
    Y = bn(conv(Y, p["w2"], p["b2"], 1, 1), p["g2"], p["be2"])
    X = conv(x, p["w3"], p["b3"], strides, 0) if use_1x1conv else q(x)
    return jax.nn.relu(Y + X)


# ----------------------------------- main --------------------------------------

def _make_params(key, cin, cout, use_1x1conv):
    k = jax.random.split(key, 6)
    p = {
        "w1": 0.1 * jax.random.normal(k[0], (cout, cin, 3, 3), jnp.float32),
        "b1": 0.01 * jax.random.normal(k[1], (cout,), jnp.float32),
        "w2": 0.1 * jax.random.normal(k[2], (cout, cout, 3, 3), jnp.float32),
        "b2": 0.01 * jax.random.normal(k[3], (cout,), jnp.float32),
        "g1": jnp.ones((cout,), jnp.float32),
        "be1": jnp.zeros((cout,), jnp.float32),
        "g2": jnp.ones((cout,), jnp.float32),
        "be2": jnp.zeros((cout,), jnp.float32),
    }
    if use_1x1conv:
        p["w3"] = 0.1 * jax.random.normal(k[4], (cout, cin, 1, 1), jnp.float32)
        p["b3"] = 0.01 * jax.random.normal(k[5], (cout,), jnp.float32)
    else:
        p["w3"] = jnp.zeros((cout, cin, 1, 1), jnp.float32)
        p["b3"] = jnp.zeros((cout,), jnp.float32)
    return p


def _check(x, p, use_1x1conv, strides, expect_shape, max_m_tile=None):
    out = jax.block_until_ready(
        residual_forward(x, p, use_1x1conv, strides, max_m_tile=max_m_tile))
    assert out.shape == expect_shape, out.shape
    # Kernel-logic check: reference with the same bf16 rounding of the matmul
    # operands / intermediates (everything else f32) must match tightly.
    ref_q = ref_residual(x, p, use_1x1conv, strides, quantize_matmul_inputs=True)
    err = float(jnp.max(jnp.abs(out - ref_q)))
    assert err < 1e-2, f"max abs err vs bf16-operand reference: {err}"
    # Semantic check vs the full-f32 PyTorch-equivalent math; the gap is purely
    # the bf16 operand rounding used to feed the MXU.
    ref_f = ref_residual(x, p, use_1x1conv, strides)
    rel = float(jnp.linalg.norm(out - ref_f) / jnp.linalg.norm(ref_f))
    assert rel < 5e-2, f"relative L2 err vs f32 reference: {rel}"


if __name__ == "__main__":
    key = jax.random.PRNGKey(0)
    kx1, kp1, kx2, kp2, kx3, kp3, kx4, kp4 = jax.random.split(key, 8)

    # Spec config: X = rand(4, 3, 6, 6); Residual(3, 6, use_1x1conv=True, strides=2)
    x1 = jax.random.uniform(kx1, (4, 3, 6, 6), dtype=jnp.float32)
    p1 = _make_params(kp1, 3, 6, True)
    _check(x1, p1, use_1x1conv=True, strides=2, expect_shape=(4, 6, 3, 3))

    # Identity-shortcut config: Residual(4, 4, use_1x1conv=False, strides=1)
    x2 = jax.random.uniform(kx2, (4, 4, 6, 6), dtype=jnp.float32)
    p2 = _make_params(kp2, 4, 4, False)
    _check(x2, p2, use_1x1conv=False, strides=1, expect_shape=(4, 4, 6, 6))

    # Multi-M-tile two-phase-BN path (forced small M tile), merged 1x1-conv shortcut.
    x3 = jax.random.uniform(kx3, (2, 8, 16, 16), dtype=jnp.float32)
    p3 = _make_params(kp3, 8, 16, True)
    _check(x3, p3, use_1x1conv=True, strides=2, expect_shape=(2, 16, 8, 8),
           max_m_tile=32)

    # Multi-M-tile two-phase-BN path, identity shortcut.
    x4 = jax.random.uniform(kx4, (2, 8, 16, 16), dtype=jnp.float32)
    p4 = _make_params(kp4, 8, 8, False)
    _check(x4, p4, use_1x1conv=False, strides=1, expect_shape=(2, 8, 16, 16),
           max_m_tile=128)

    print("KERNEL_OK")
</pallas_src>

<mosaic_0001>
module attributes {stable_mosaic.version = 11 : i64} {
  func.func @_conv_bn_relu_kernel(%arg0: i32, %arg1: i32, %arg2: i32, %arg3: memref<40x128xbf16, #tpu.memory_space<vmem>>, %arg4: memref<128x128xbf16, #tpu.memory_space<vmem>>, %arg5: memref<1x128xf32, #tpu.memory_space<vmem>>, %arg6: memref<1x128xf32, #tpu.memory_space<vmem>>, %arg7: memref<40x128xbf16, #tpu.memory_space<vmem>>, %arg8: memref<1x128xf32, #tpu.memory_space<vmem>>, %arg9: memref<1x128xf32, #tpu.memory_space<vmem>>, %arg10: memref<1x128xf32, #tpu.memory_space<vmem>>) attributes {dimension_semantics = [#tpu.dimension_semantics<parallel>, #tpu.dimension_semantics<arbitrary>, #tpu.dimension_semantics<arbitrary>], iteration_bounds = array<i64: 1, 1, 1>, scalar_prefetch = 0 : i64, scratch_operands = 3 : i64, tpu.core_type = #tpu.core_type<tc>, window_params = [{transform_indices = @transform_0, window_bounds = array<i64: 40, 128>}, {transform_indices = @transform_1, window_bounds = array<i64: 128, 128>}, {transform_indices = @transform_2, window_bounds = array<i64: 1, 128>}, {transform_indices = @transform_3, window_bounds = array<i64: 1, 128>}, {transform_indices = @transform_4, window_bounds = array<i64: 40, 128>}]} {
    %c0 = arith.constant 0 : index
    %c0_0 = arith.constant 0 : index
    %0 = vector.load %arg3[%c0, %c0_0] : memref<40x128xbf16, #tpu.memory_space<vmem>>, vector<40x128xbf16>
    %c0_1 = arith.constant 0 : index
    %c0_2 = arith.constant 0 : index
    %1 = vector.load %arg4[%c0_1, %c0_2] : memref<128x128xbf16, #tpu.memory_space<vmem>>, vector<128x128xbf16>
    %cst = arith.constant dense<0.000000e+00> : vector<40x128xf32>
    %2 = tpu.matmul %0, %1, %cst {dimension_numbers = #tpu.dot_dimension_numbers<[1], [0], [0], [1], [0, 0, 1, 1], [], []>} : vector<40x128xbf16>, vector<128x128xbf16>, vector<40x128xf32> -> vector<40x128xf32>
    %c0_i32 = arith.constant 0 : i32
    %3 = arith.cmpi eq, %arg1, %c0_i32 : i32
    %c0_i32_3 = arith.constant 0 : i32
    %4 = arith.cmpi eq, %arg2, %c0_i32_3 : i32
    %5 = arith.andi %3, %4 : i1
    %6 = arith.extui %5 : i1 to i32
    %c0_i32_4 = arith.constant 0 : i32
    %7 = arith.cmpi ne, %6, %c0_i32_4 : i32
    scf.if %7 {
      %cst_9 = arith.constant dense<0.000000e+00> : vector<128xf32>
      %14 = vector.multi_reduction <add>, %2, %cst_9 [0] : vector<40x128xf32> to vector<128xf32>
      %15 = vector.shape_cast %14 : vector<128xf32> to vector<1x128xf32>
      %cst_10 = arith.constant 4.000000e+01 : f32
      %16 = vector.broadcast %cst_10 : f32 to vector<1x128xf32>
      %17 = arith.divf %15, %16 : vector<1x128xf32>
      %c0_11 = arith.constant 0 : index
      %c0_12 = arith.constant 0 : index
      %18 = vector.load %arg8[%c0_11, %c0_12] : memref<1x128xf32, #tpu.memory_space<vmem>>, vector<1x128xf32>
      tpu.vector_store %arg8[%c0_11, %c0_12], %17 {strides = array<i32>} : memref<1x128xf32, #tpu.memory_space<vmem>>, vector<1x128xf32>,
      %cst_13 = arith.constant 0.000000e+00 : f32
      %19 = vector.broadcast %cst_13 : f32 to vector<1x128xf32>
      %c0_14 = arith.constant 0 : index
      %c0_15 = arith.constant 0 : index
      %20 = vector.load %arg9[%c0_14, %c0_15] : memref<1x128xf32, #tpu.memory_space<vmem>>, vector<1x128xf32>
      tpu.vector_store %arg9[%c0_14, %c0_15], %19 {strides = array<i32>} : memref<1x128xf32, #tpu.memory_space<vmem>>, vector<1x128xf32>,
      %cst_16 = arith.constant 0.000000e+00 : f32
      %21 = vector.broadcast %cst_16 : f32 to vector<1x128xf32>
      %c0_17 = arith.constant 0 : index
      %c0_18 = arith.constant 0 : index
      %22 = vector.load %arg10[%c0_17, %c0_18] : memref<1x128xf32, #tpu.memory_space<vmem>>, vector<1x128xf32>
      tpu.vector_store %arg10[%c0_17, %c0_18], %21 {strides = array<i32>} : memref<1x128xf32, #tpu.memory_space<vmem>>, vector<1x128xf32>,
    } else {
    }
    %c0_i32_5 = arith.constant 0 : i32
    %8 = arith.cmpi eq, %arg1, %c0_i32_5 : i32
    %9 = arith.extui %8 : i1 to i32
    %c0_i32_6 = arith.constant 0 : i32
    %10 = arith.cmpi ne, %9, %c0_i32_6 : i32
    scf.if %10 {
      %c0_9 = arith.constant 0 : index
      %c0_10 = arith.constant 0 : index
      %14 = vector.load %arg8[%c0_9, %c0_10] : memref<1x128xf32, #tpu.memory_space<vmem>>, vector<1x128xf32>
      %15 = vector.broadcast %14 : vector<1x128xf32> to vector<40x128xf32>
      %16 = arith.subf %2, %15 : vector<40x128xf32>
      %c0_11 = arith.constant 0 : index
      %c0_12 = arith.constant 0 : index
      %17 = vector.load %arg9[%c0_11, %c0_12] : memref<1x128xf32, #tpu.memory_space<vmem>>, vector<1x128xf32>
      %cst_13 = arith.constant dense<0.000000e+00> : vector<128xf32>
      %18 = vector.multi_reduction <add>, %16, %cst_13 [0] : vector<40x128xf32> to vector<128xf32>
      %19 = vector.shape_cast %18 : vector<128xf32> to vector<1x128xf32>
      %20 = arith.addf %17, %19 : vector<1x128xf32>
      %c0_14 = arith.constant 0 : index
      %c0_15 = arith.constant 0 : index
      %21 = vector.load %arg9[%c0_14, %c0_15] : memref<1x128xf32, #tpu.memory_space<vmem>>, vector<1x128xf32>
      tpu.vector_store %arg9[%c0_14, %c0_15], %20 {strides = array<i32>} : memref<1x128xf32, #tpu.memory_space<vmem>>, vector<1x128xf32>,
      %c0_16 = arith.constant 0 : index
      %c0_17 = arith.constant 0 : index
      %22 = vector.load %arg10[%c0_16, %c0_17] : memref<1x128xf32, #tpu.memory_space<vmem>>, vector<1x128xf32>
      %23 = arith.mulf %16, %16 : vector<40x128xf32>
      %cst_18 = arith.constant dense<0.000000e+00> : vector<128xf32>
      %24 = vector.multi_reduction <add>, %23, %cst_18 [0] : vector<40x128xf32> to vector<128xf32>
      %25 = vector.shape_cast %24 : vector<128xf32> to vector<1x128xf32>
      %26 = arith.addf %22, %25 : vector<1x128xf32>
      %c0_19 = arith.constant 0 : index
      %c0_20 = arith.constant 0 : index
      %27 = vector.load %arg10[%c0_19, %c0_20] : memref<1x128xf32, #tpu.memory_space<vmem>>, vector<1x128xf32>
      tpu.vector_store %arg10[%c0_19, %c0_20], %26 {strides = array<i32>} : memref<1x128xf32, #tpu.memory_space<vmem>>, vector<1x128xf32>,
    } else {
    }
    %c0_i32_7 = arith.constant 0 : i32
    %11 = arith.cmpi eq, %arg1, %c0_i32_7 : i32
    %12 = arith.extui %11 : i1 to i32
    %c0_i32_8 = arith.constant 0 : i32
    %13 = arith.cmpi ne, %12, %c0_i32_8 : i32
    scf.if %13 {
      %c0_9 = arith.constant 0 : index
      %c0_10 = arith.constant 0 : index
      %14 = vector.load %arg8[%c0_9, %c0_10] : memref<1x128xf32, #tpu.memory_space<vmem>>, vector<1x128xf32>
      %c0_11 = arith.constant 0 : index
      %c0_12 = arith.constant 0 : index
      %15 = vector.load %arg9[%c0_11, %c0_12] : memref<1x128xf32, #tpu.memory_space<vmem>>, vector<1x128xf32>
      %cst_13 = arith.constant 4.000000e+00 : f32
      %16 = vector.broadcast %cst_13 : f32 to vector<1x128xf32>
      %17 = arith.mulf %16, %14 : vector<1x128xf32>
      %18 = arith.addf %15, %17 : vector<1x128xf32>
      %c0_14 = arith.constant 0 : index
      %c0_15 = arith.constant 0 : index
      %19 = vector.load %arg10[%c0_14, %c0_15] : memref<1x128xf32, #tpu.memory_space<vmem>>, vector<1x128xf32>
      %cst_16 = arith.constant 4.000000e+00 : f32
      %20 = vector.broadcast %cst_16 : f32 to vector<1x128xf32>
      %21 = arith.mulf %20, %14 : vector<1x128xf32>
      %22 = arith.mulf %21, %14 : vector<1x128xf32>
      %23 = arith.subf %19, %22 : vector<1x128xf32>
      %cst_17 = arith.constant 0.027777778 : f32
      %24 = vector.broadcast %cst_17 : f32 to vector<1x128xf32>
      %25 = arith.mulf %18, %24 : vector<1x128xf32>
      %cst_18 = arith.constant 0.027777778 : f32
      %26 = vector.broadcast %cst_18 : f32 to vector<1x128xf32>
      %27 = arith.mulf %23, %26 : vector<1x128xf32>
      %28 = arith.mulf %25, %25 : vector<1x128xf32>
      %29 = arith.subf %27, %28 : vector<1x128xf32>
      %cst_19 = arith.constant 0.000000e+00 : f32
      %30 = vector.broadcast %cst_19 : f32 to vector<1x128xf32>
      %31 = arith.maximumf %29, %30 : vector<1x128xf32>
      %cst_20 = arith.constant 9.99999974E-6 : f32
      %32 = vector.broadcast %cst_20 : f32 to vector<1x128xf32>
      %33 = arith.addf %31, %32 : vector<1x128xf32>
      %34 = math.rsqrt %33 : vector<1x128xf32>
      %c0_21 = arith.constant 0 : index
      %c0_22 = arith.constant 0 : index
      %35 = vector.load %arg5[%c0_21, %c0_22] : memref<1x128xf32, #tpu.memory_space<vmem>>, vector<1x128xf32>
      %36 = arith.mulf %34, %35 : vector<1x128xf32>
      %37 = arith.addf %25, %14 : vector<1x128xf32>
      %38 = vector.broadcast %37 : vector<1x128xf32> to vector<40x128xf32>
      %39 = arith.subf %2, %38 : vector<40x128xf32>
      %40 = vector.broadcast %36 : vector<1x128xf32> to vector<40x128xf32>
      %41 = arith.mulf %39, %40 : vector<40x128xf32>
      %c0_23 = arith.constant 0 : index
      %c0_24 = arith.constant 0 : index
      %42 = vector.load %arg6[%c0_23, %c0_24] : memref<1x128xf32, #tpu.memory_space<vmem>>, vector<1x128xf32>
      %43 = vector.broadcast %42 : vector<1x128xf32> to vector<40x128xf32>
      %44 = arith.addf %41, %43 : vector<40x128xf32>
      %cst_25 = arith.constant 0.000000e+00 : f32
      %45 = vector.broadcast %cst_25 : f32 to vector<40x128xf32>
      %46 = arith.addf %44, %45 : vector<40x128xf32>
      %cst_26 = arith.constant 0.000000e+00 : f32
      %47 = vector.broadcast %cst_26 : f32 to vector<40x128xf32>
      %48 = arith.maximumf %46, %47 : vector<40x128xf32>
      %49 = arith.truncf %48 : vector<40x128xf32> to vector<40x128xbf16>
      %c0_27 = arith.constant 0 : index
      %c0_28 = arith.constant 0 : index
      %50 = vector.load %arg7[%c0_27, %c0_28] : memref<40x128xbf16, #tpu.memory_space<vmem>>, vector<40x128xbf16>
      tpu.vector_store %arg7[%c0_27, %c0_28], %49 {strides = array<i32>} : memref<40x128xbf16, #tpu.memory_space<vmem>>, vector<40x128xbf16>,
    } else {
    }
    return
  }
  func.func @transform_0(%arg0: i32, %arg1: i32, %arg2: i32) -> (i32, i32) {
    %c0_i32 = arith.constant 0 : i32
    %c0_i32_0 = arith.constant 0 : i32
    return %arg2, %c0_i32 : i32, i32
  }
  func.func @transform_1(%arg0: i32, %arg1: i32, %arg2: i32) -> (i32, i32) {
    %c0_i32 = arith.constant 0 : i32
    %c0_i32_0 = arith.constant 0 : i32
    return %c0_i32, %arg0 : i32, i32
  }
  func.func @transform_2(%arg0: i32, %arg1: i32, %arg2: i32) -> (i32, i32) {
    %c0_i32 = arith.constant 0 : i32
    %c0_i32_0 = arith.constant 0 : i32
    return %c0_i32, %arg0 : i32, i32
  }
  func.func @transform_3(%arg0: i32, %arg1: i32, %arg2: i32) -> (i32, i32) {
    %c0_i32 = arith.constant 0 : i32
    %c0_i32_0 = arith.constant 0 : i32
    return %c0_i32, %arg0 : i32, i32
  }
  func.func @transform_4(%arg0: i32, %arg1: i32, %arg2: i32) -> (i32, i32) {
    %c0_i32 = arith.constant 0 : i32
    return %arg2, %arg0 : i32, i32
  }
}

</mosaic_0001>

<llo_original>
// kernel: tpu_custom_call.1
$region0: #{tpu_custom_call.1}
  #allocation0 [shape = 'u32[]', space=smem, size = 0x4, offset = 0x4, fixed_abs, tag = 'smem constant byte address 0x4 - core index']
  #allocation1 [shape = 'u32[144,128]{1,0:T(1,128)}', space=vmem, size = 0x12000, scoped, tag = 'internal scratch']
  #allocation2 [shape = 'f32[1,128]{1,0:T(1,128)}', space=vmem, size = 0x200, scoped, tag = 'scratch operand']
  #allocation3 [shape = 'f32[1,128]{1,0:T(1,128)}', space=vmem, size = 0x200, scoped, tag = 'scratch operand']
  #allocation4 [shape = 'f32[1,128]{1,0:T(1,128)}', space=vmem, size = 0x200, scoped, tag = 'scratch operand']
  %s0 = inlined_call_operand.hbm [shape: bf16[40,128], index: 0, kind: input, shape index: {}]
  %s1 = inlined_call_operand.hbm [shape: bf16[128,128], index: 1, kind: input, shape index: {}]
  %s2 = inlined_call_operand.vmem [shape: f32[1,128], index: 2, kind: input, shape index: {}]
  %s3 = inlined_call_operand.vmem [shape: f32[1,128], index: 3, kind: input, shape index: {}]
  %s4 = inlined_call_operand.hbm [shape: bf16[40,128], index: 4, kind: output, shape index: {}]
  %s5 = sld [smem:[#allocation0]]
  $region42: #{tpu_custom_call.1} parent=0
    _
  %s7 = ssub.s32 1, %s5
  %s8 = scalar_select 0, %s7, %s5
  $region1: #{tpu_custom_call.1} parent=0
    #allocation5 [shape = 'u8[10240]{0}', space=vmem, size = 0x2800, scoped, tag = 'input window, operand 0, single buffered']
    #allocation6 [shape = 's32[1]{0}', space=sflag, size = 0x4, scoped, tag = 'scoped memory for tpu_custom_call.1']
    #allocation7 [shape = 's32[1]{0}', space=sflag, size = 0x4, scoped, tag = 'scoped memory for tpu_custom_call.1']
    #allocation8 [shape = 'u8[32768]{0}', space=vmem, size = 0x8000, scoped, tag = 'input window, operand 1, single buffered']
    #allocation9 [shape = 's32[1]{0}', space=sflag, size = 0x4, scoped, tag = 'scoped memory for tpu_custom_call.1']
    #allocation10 [shape = 'u8[10240]{0}', space=vmem, size = 0x2800, scoped, tag = 'output window, operand 0, single buffered']
    %9 = vsyncpa [#allocation6], 0
    %10 = vsyncpa [#allocation9], 0
    %11 = vsyncpa [#allocation7], 0
    // Predicated region
    $region2: #{tpu_custom_call.1} parent=1 // pred_check
      _
    $region3: #{tpu_custom_call.1} parent=1 // pred_check_branch
      %13 = sbr.rel (0) target = $region5
    $region4: #{tpu_custom_call.1} parent=1 // pred_region
      %s15 = ssub.s32 320, 320
      %16 = vsyncadd [#allocation6], %s15
      %s17 = sshll.u32 [#allocation5], 4
      %s18 = int_to_ptr.vmem [resolvable:$true] %s17
      %23 = dma.hbm_to_vmem [thread:$0]  %s0, 320, %s18, [#allocation6], 64, 64, 4
    $region5: #{tpu_custom_call.1} parent=1 // pred_fallthru
      _
    // Predicated region
    $region6: #{tpu_custom_call.1} parent=1 // pred_check
      _
    $region7: #{tpu_custom_call.1} parent=1 // pred_check_branch
      %25 = sbr.rel (0) target = $region9
    $region8: #{tpu_custom_call.1} parent=1 // pred_region
      %s27 = ssub.s32 1024, 1024
      %28 = vsyncadd [#allocation9], %s27
      %s29 = sshll.u32 [#allocation8], 4
      %s30 = int_to_ptr.vmem [resolvable:$true] %s29
      %35 = dma.hbm_to_vmem [thread:$0]  %s1, 1024, %s30, [#allocation9], 64, 64, 4
    $region9: #{tpu_custom_call.1} parent=1 // pred_fallthru
      _
    // Predicated region
    $region10: #{tpu_custom_call.1} parent=1 // pred_check
      _
    $region11: #{tpu_custom_call.1} parent=1 // pred_check_branch
      %37 = sbr.rel (0) target = $region13
    $region12: #{tpu_custom_call.1} parent=1 // pred_region
      _
    $region13: #{tpu_custom_call.1} parent=1 // pred_fallthru
      _
    // Predicated region
    $region14: #{tpu_custom_call.1} parent=1 // pred_check
      _
    $region15: #{tpu_custom_call.1} parent=1 // pred_check_branch
      %39 = sbr.rel (0) target = $region17
    $region16: #{tpu_custom_call.1} parent=1 // pred_region
      _
    $region17: #{tpu_custom_call.1} parent=1 // pred_fallthru
      _
    // Predicated region
    $region18: #{tpu_custom_call.1} parent=1 // pred_check
      _
    $region19: #{tpu_custom_call.1} parent=1 // pred_check_branch
      %41 = sbr.rel (0) target = $region21
    $region20: #{tpu_custom_call.1} parent=1 // pred_region
      %42 = dma.done [#allocation6], 320
    $region21: #{tpu_custom_call.1} parent=1 // pred_fallthru
      _
    // Predicated region
    $region22: #{tpu_custom_call.1} parent=1 // pred_check
      _
    $region23: #{tpu_custom_call.1} parent=1 // pred_check_branch
      %44 = sbr.rel (0) target = $region25
    $region24: #{tpu_custom_call.1} parent=1 // pred_region
      %45 = dma.done [#allocation9], 1024
    $region25: #{tpu_custom_call.1} parent=1 // pred_fallthru
      _
    %v47 = vld [vmem:[#allocation5] sm:$0xf]
    %v48 = vld [vmem:[#allocation5 + $0x4] sm:$0xf]
    %v49 = vld [vmem:[#allocation5 + $0x8] sm:$0xf]
    %v50 = vld [vmem:[#allocation5 + $0xc] sm:$0xf]
    %v51 = vld [vmem:[#allocation5 + $0x10] sm:$0xf]
    %v52 = vld [vmem:[#allocation8] sm:$0xf]
    %v53 = vld [vmem:[#allocation8 + $0x4] sm:$0xf]
    %v54 = vld [vmem:[#allocation8 + $0x8] sm:$0xf]
    %v55 = vld [vmem:[#allocation8 + $0xc] sm:$0xf]
    %v56 = vld [vmem:[#allocation8 + $0x10] sm:$0xf]
    %v57 = vld [vmem:[#allocation8 + $0x14] sm:$0xf]
    %v58 = vld [vmem:[#allocation8 + $0x18] sm:$0xf]
    %v59 = vld [vmem:[#allocation8 + $0x1c] sm:$0xf]
    %v60 = vld [vmem:[#allocation8 + $0x20] sm:$0xf]
    %v61 = vld [vmem:[#allocation8 + $0x24] sm:$0xf]
    %v62 = vld [vmem:[#allocation8 + $0x28] sm:$0xf]
    %v63 = vld [vmem:[#allocation8 + $0x2c] sm:$0xf]
    %v64 = vld [vmem:[#allocation8 + $0x30] sm:$0xf]
    %v65 = vld [vmem:[#allocation8 + $0x34] sm:$0xf]
    %v66 = vld [vmem:[#allocation8 + $0x38] sm:$0xf]
    %v67 = vld [vmem:[#allocation8 + $0x3c] sm:$0xf]
    %v73 = vunpack.c.l.b16 %v47
    %v74 = vunpack.c.l.b16 %v48
    %v75 = vunpack.c.l.b16 %v49
    %v76 = vunpack.c.l.b16 %v50
    %v77 = vunpack.c.l.b16 %v51
    %v78 = vpack.c.b16 %v74, %v73
    %v79 = vpack.c.b16 %v76, %v75
    %v80 = vpack.c.b16 %v77, %v77
    %v100 = vunpack.c.l.b16 %v52
    %v101 = vunpack.c.l.b16 %v53
    %v102 = vunpack.c.l.b16 %v54
    %v103 = vunpack.c.l.b16 %v55
    %v104 = vunpack.c.l.b16 %v56
    %v105 = vunpack.c.l.b16 %v57
    %v106 = vunpack.c.l.b16 %v58
    %v107 = vunpack.c.l.b16 %v59
    %v108 = vunpack.c.l.b16 %v60
    %v109 = vunpack.c.l.b16 %v61
    %v110 = vunpack.c.l.b16 %v62
    %v111 = vunpack.c.l.b16 %v63
    %v112 = vunpack.c.l.b16 %v64
    %v113 = vunpack.c.l.b16 %v65
    %v114 = vunpack.c.l.b16 %v66
    %v115 = vunpack.c.l.b16 %v67
    %v116 = vpack.c.b16 %v101, %v100
    %v117 = vpack.c.b16 %v103, %v102
    %v118 = vpack.c.b16 %v105, %v104
    %v119 = vpack.c.b16 %v107, %v106
    %v120 = vpack.c.b16 %v109, %v108
    %v121 = vpack.c.b16 %v111, %v110
    %v122 = vpack.c.b16 %v113, %v112
    %v123 = vpack.c.b16 %v115, %v114
    %132 = vmatprep.subr.bf16.mxu0 0
    %133 = vmatpush1.bf16.msra.mxu0 %v123
    %134 = vmatprep.subr.bf16.mxu0 0
    %135 = vmatpush1.bf16.msra.mxu0 %v122
    %136 = vmatprep.subr.bf16.mxu0 0
    %137 = vmatpush1.bf16.msra.mxu0 %v121
    %138 = vmatprep.subr.bf16.mxu0 0
    %139 = vmatpush1.bf16.msra.mxu0 %v120
    %140 = vmatprep.subr.bf16.mxu0 0
    %141 = vmatpush1.bf16.msra.mxu0 %v119
    %142 = vmatprep.subr.bf16.mxu0 0
    %143 = vmatpush1.bf16.msra.mxu0 %v118
    %144 = vmatprep.subr.bf16.mxu0 0
    %145 = vmatpush1.bf16.msra.mxu0 %v117
    %146 = vmatprep.subr.bf16.mxu0 0
    %147 = vmatpush1.bf16.msra.mxu0 %v116
    %148 = vmatprep.subr.bf16.mxu0 0
    %149 = vmatpush2.bf16.msra.mxu0 0
    %150 = vmatprep.subr.bf16.mxu0 0
    %151 = vmatpush2.bf16.msra.mxu0 0
    %152 = vmatprep.subr.bf16.mxu0 0
    %153 = vmatpush2.bf16.msra.mxu0 0
    %154 = vmatprep.subr.bf16.mxu0 0
    %155 = vmatpush2.bf16.msra.mxu0 0
    %156 = vmatprep.subr.bf16.mxu0 0
    %157 = vmatpush2.bf16.msra.mxu0 0
    %158 = vmatprep.subr.bf16.mxu0 0
    %159 = vmatpush2.bf16.msra.mxu0 0
    %160 = vmatprep.subr.bf16.mxu0 0
    %161 = vmatpush2.bf16.msra.mxu0 0
    %162 = vmatprep.subr.bf16.mxu0 0
    %163 = vmatpush2.bf16.msra.mxu0 0
    %164 = vmatprep.mubr.bf16.mxu0 0
    %165 = vmatmul.mubr.bf16.gmra.mxu0 %v78
    %v166 = vpop.f32.mrf.mxu0
    %v167 = vadd.f32 0.0, %v166
    %v168 = vpop.f32.mrf.mxu0
    %v169 = vpop.f32.mrf.mxu0
    %v170 = vadd.f32 0.0, %v169
    %v171 = vpop.f32.mrf.mxu0
    %172 = vmatprep.mubr.bf16.mxu0 0
    %173 = vmatmul.mubr.bf16.gmra.mxu0 %v79
    %v174 = vpop.f32.mrf.mxu0
    %v175 = vadd.f32 0.0, %v174
    %v176 = vpop.f32.mrf.mxu0
    %v177 = vpop.f32.mrf.mxu0
    %v178 = vadd.f32 0.0, %v177
    %v179 = vpop.f32.mrf.mxu0
    %180 = vmatprep.mubr.bf16.mxu0 0
    %181 = vmatmul.mubr.bf16.gmra.mxu0 %v80
    %v182 = vpop.f32.mrf.mxu0
    %v183 = vadd.f32 0.0, %v182
    %v184 = vpop.f32.mrf.mxu0
    %v185 = vpop.f32.mrf.mxu0
    %v186 = vpop.f32.mrf.mxu0
    %187 = vdwg.mxu0
    %p188 = scmp.eq.s32.totalorder 0, 0
    %p189 = scmp.eq.s32.totalorder 0, 0
    %p190 = pnand %p188, %p189
    %p191 = pneg %p190
    // Predicated region
    $region26: #{tpu_custom_call.1} parent=1 // pred_check
      _
    $region27: #{tpu_custom_call.1} parent=1 // pred_check_branch
      %193 = sbr.rel (%p190) target = $region29
    $region28: #{tpu_custom_call.1} parent=1 // pred_region
      %v194 = vadd.f32 %v167, %v170
      %v195 = vadd.f32 %v194, %v175
      %v196 = vadd.f32 %v195, %v178
      %v197 = vadd.f32 %v196, %v183
      %v198 = vrot.slane %v197, 4
      %v199 = vadd.f32 %v197, %v198
      %v200 = vrot.slane %v199, 2
      %v201 = vadd.f32 %v199, %v200
      %v202 = vrot.slane %v201, 1
      %v203 = vadd.f32 %v201, %v202
      %v204 = vrcp.pop 40.0
      %v205 = vmul.f32 %v203, %v204
      %206 = vst [vmem:[#allocation2] sm:$0x1] %v205
      %207 = vst [vmem:[#allocation3] sm:$0x1] 0.0
      %208 = vst [vmem:[#allocation4] sm:$0x1] 0.0
    $region29: #{tpu_custom_call.1} parent=1 // pred_fallthru
      _
    // Predicated region
    $region30: #{tpu_custom_call.1} parent=1 // pred_check
      %p209 = pneg %p188
    $region31: #{tpu_custom_call.1} parent=1 // pred_check_branch
      %211 = sbr.rel (%p209) target = $region33
    $region32: #{tpu_custom_call.1} parent=1 // pred_region
      %v212 = vld [vmem:[#allocation2] sm:$0x1]
      %v214 = vlaneseq
      %v215 = vshrl.u32 %v214, 7
      %v216 = vsub.s32 0, %v215
      %v217 = vrot.slane %v212, %v216
      %v219 = vsub.f32 %v167, %v217
      %v220 = vsub.f32 %v170, %v217
      %v221 = vsub.f32 %v175, %v217
      %v222 = vsub.f32 %v178, %v217
      %v223 = vsub.f32 %v183, %v217
      %v224 = vld [vmem:[#allocation3] sm:$0x1]
      %v225 = vadd.f32 %v219, %v220
      %v226 = vadd.f32 %v225, %v221
      %v227 = vadd.f32 %v226, %v222
      %v228 = vadd.f32 %v227, %v223
      %v229 = vrot.slane %v228, 4
      %v230 = vadd.f32 %v228, %v229
      %v231 = vrot.slane %v230, 2
      %v232 = vadd.f32 %v230, %v231
      %v233 = vrot.slane %v232, 1
      %v234 = vadd.f32 %v232, %v233
      %v235 = vadd.f32 %v224, %v234
      %236 = vst [vmem:[#allocation3] sm:$0x1] %v235
      %v237 = vld [vmem:[#allocation4] sm:$0x1]
      %v238 = vmul.f32 %v219, %v219
      %v239 = vmul.f32 %v220, %v220
      %v240 = vmul.f32 %v221, %v221
      %v241 = vmul.f32 %v222, %v222
      %v242 = vmul.f32 %v223, %v223
      %v243 = vadd.f32 %v238, %v239
      %v244 = vadd.f32 %v243, %v240
      %v245 = vadd.f32 %v244, %v241
      %v246 = vadd.f32 %v245, %v242
      %v247 = vrot.slane %v246, 4
      %v248 = vadd.f32 %v246, %v247
      %v249 = vrot.slane %v248, 2
      %v250 = vadd.f32 %v248, %v249
      %v251 = vrot.slane %v250, 1
      %v252 = vadd.f32 %v250, %v251
      %v253 = vadd.f32 %v237, %v252
      %254 = vst [vmem:[#allocation4] sm:$0x1] %v253
      %v255 = vld [vmem:[#allocation2] sm:$0x1]
      %v256 = vld [vmem:[#allocation3] sm:$0x1]
      %v257 = vmul.f32 %v255, 4.0
      %v258 = vadd.f32 %v256, %v257
      %v259 = vld [vmem:[#allocation4] sm:$0x1]
      %v260 = vmul.f32 %v257, %v255
      %v261 = vsub.f32 %v259, %v260
      %v262 = vmul.f32 %v258, 0.027777778
      %v263 = vmul.f32 %v261, 0.027777778
      %v264 = vmul.f32 %v262, %v262
      %v265 = vsub.f32 %v263, %v264
      %v266 = vmax.f32 %v265, 0.0
      %v267 = vadd.f32 %v266, 1e-05
      %v268 = vrsqrt.pop %v267
      %v269 = vld [vmem:[%s2] sm:$0x1]
      %v270 = vmul.f32 %v268, %v269
      %v271 = vadd.f32 %v262, %v255
      %v273 = vlaneseq
      %v274 = vshrl.u32 %v273, 7
      %v275 = vsub.s32 0, %v274
      %v276 = vrot.slane %v271, %v275
      %v278 = vsub.f32 %v167, %v276
      %v279 = vsub.f32 %v170, %v276
      %v280 = vsub.f32 %v175, %v276
      %v281 = vsub.f32 %v178, %v276
      %v282 = vsub.f32 %v183, %v276
      %v284 = vlaneseq
      %v285 = vshrl.u32 %v284, 7
      %v286 = vsub.s32 0, %v285
      %v287 = vrot.slane %v270, %v286
      %v289 = vmul.f32 %v278, %v287
      %v290 = vmul.f32 %v279, %v287
      %v291 = vmul.f32 %v280, %v287
      %v292 = vmul.f32 %v281, %v287
      %v293 = vmul.f32 %v282, %v287
      %v294 = vld [vmem:[%s3] sm:$0x1]
      %v296 = vlaneseq
      %v297 = vshrl.u32 %v296, 7
      %v298 = vsub.s32 0, %v297
      %v299 = vrot.slane %v294, %v298
      %v301 = vadd.f32 %v289, %v299
      %v302 = vadd.f32 %v290, %v299
      %v303 = vadd.f32 %v291, %v299
      %v304 = vadd.f32 %v292, %v299
      %v305 = vadd.f32 %v293, %v299
      %v306 = vadd.f32 %v301, 0.0
      %v307 = vadd.f32 %v302, 0.0
      %v308 = vadd.f32 %v303, 0.0
      %v309 = vadd.f32 %v304, 0.0
      %v310 = vadd.f32 %v305, 0.0
      %v311 = vmax.f32 %v306, 0.0
      %v312 = vmax.f32 %v307, 0.0
      %v313 = vmax.f32 %v308, 0.0
      %v314 = vmax.f32 %v309, 0.0
      %v315 = vmax.f32 %v310, 0.0
      %v316 = vpack.c.bf16 %v312, %v311
      %v317 = vpack.c.bf16 %v314, %v313
      %v318 = vpack.c.bf16 %v315, %v315
      %v322 = vunpack.c.l.b16 %v316
      %v323 = vunpack.c.h.b16 %v316
      %v324 = vunpack.c.l.b16 %v317
      %v325 = vunpack.c.h.b16 %v317
      %v326 = vunpack.c.l.b16 %v318
      %v327 = vpack.c.b16 %v322, %v322
      %v328 = vpack.c.b16 %v323, %v323
      %v329 = vpack.c.b16 %v324, %v324
      %v330 = vpack.c.b16 %v325, %v325
      %v331 = vpack.c.b16 %v326, %v326
      %337 = vst [vmem:[#allocation10] sm:$0xf] %v327
      %338 = vst [vmem:[#allocation10 + $0x4] sm:$0xf] %v328
      %339 = vst [vmem:[#allocation10 + $0x8] sm:$0xf] %v329
      %340 = vst [vmem:[#allocation10 + $0xc] sm:$0xf] %v330
      %341 = vst [vmem:[#allocation10 + $0x10] sm:$0xf] %v331
    $region33: #{tpu_custom_call.1} parent=1 // pred_fallthru
      _
    // Predicated region
    $region34: #{tpu_custom_call.1} parent=1 // pred_check
      _
    $region35: #{tpu_custom_call.1} parent=1 // pred_check_branch
      %343 = sbr.rel (0) target = $region37
    $region36: #{tpu_custom_call.1} parent=1 // pred_region
      %s345 = ssub.s32 320, 320
      %346 = vsyncadd [#allocation7], %s345
      %s347 = sshll.u32 [#allocation10], 4
      %s348 = int_to_ptr.vmem [resolvable:$true] %s347
      %353 = dma.vmem_to_hbm [thread:$0]  %s348, 320, %s4, [#allocation7], 64, 64, 4
    $region37: #{tpu_custom_call.1} parent=1 // pred_fallthru
      _
    // Predicated region
    $region38: #{tpu_custom_call.1} parent=1 // pred_check
      _
    $region39: #{tpu_custom_call.1} parent=1 // pred_check_branch
      %355 = sbr.rel (0) target = $region41
    $region40: #{tpu_custom_call.1} parent=1 // pred_region
      %356 = dma.done [#allocation7], 320
    $region41: #{tpu_custom_call.1} parent=1 // pred_fallthru
      _
    %357 = vsyncpa [#allocation6], 1
    %358 = vsyncpa [#allocation9], 1
    %359 = vsyncpa [#allocation7], 1

</llo_original>
